<compile_context>
chip_gen: v6e
topology: v6e:2x2x1
jax: 0.10.0
libtpu: 0.0.40
codegen_flags: <defaults>
</compile_context>

<pallas_src>
import jax
import jax.numpy as jnp
from jax.experimental import pallas as pl
from jax.experimental.pallas import tpu as pltpu


def _transform_kernel(x_ref, w1_ref, b1_ref, w2_ref, b2_ref, o_ref):
    # x_ref : (V, R, d_in)    view-major, whole array resident in VMEM
    # w1_ref: (V, d_in, d_out)
    # b1_ref: (V, 1, d_out)   float32
    # w2_ref: (V, d_out, d_out)
    # b2_ref: (V, 1, d_out)   float32
    # o_ref : (R, d_out)      R = B * C
    V = x_ref.shape[0]
    R, d_out = o_ref.shape

    # Static unroll over views: V is tiny (4) and known at trace time, so
    # this is a handful of 2-D MXU matmuls with no grid overhead and a
    # single output store at the end.
    acc = jnp.zeros((R, d_out), jnp.float32)
    for v in range(V):
        xv = x_ref[v]                                       # (R, d_in)
        h = jnp.dot(xv, w1_ref[v],
                    preferred_element_type=jnp.float32)
        h = jnp.maximum(h + b1_ref[v], 0.0)                 # bias+ReLU in f32
        y = jnp.dot(h.astype(w2_ref.dtype), w2_ref[v],
                    preferred_element_type=jnp.float32)
        y = jnp.maximum(y + b2_ref[v], 0.0)
        acc = acc + y
    o_ref[...] = acc.astype(o_ref.dtype)


def transform_module_pallas(x, params, dim, compute_dtype=jnp.float32):
    """x: [B, V, C, H_in, W_in]; params: stacked per-view weights.

    compute_dtype: set to jnp.bfloat16 at production sizes for ~2-3x MXU
    throughput on v5e/v6e/v7x (accumulation, bias and ReLU stay float32).
    """
    B, V, C = x.shape[0], x.shape[1], x.shape[2]
    d_in = dim[0] * dim[1]
    d_out = dim[2] * dim[3]
    R = B * C

    # Free reshape of trailing spatial dims, then a view-major transpose done
    # by XLA outside the kernel (layout plumbing) so each view becomes a
    # single (R, d_in) @ (d_in, d_out) matmul inside the kernel.
    x_in = x.reshape(B, V, C, d_in)
    x_in = jnp.transpose(x_in, (1, 0, 2, 3)).reshape(V, R, d_in)

    w1 = params["w1"]                                   # [V, d_in, d_out]
    w2 = params["w2"]                                   # [V, d_out, d_out]
    b1 = params["b1"].reshape(V, 1, d_out).astype(jnp.float32)
    b2 = params["b2"].reshape(V, 1, d_out).astype(jnp.float32)

    if jnp.dtype(compute_dtype) != jnp.dtype(x_in.dtype):
        x_in = x_in.astype(compute_dtype)
        w1 = w1.astype(compute_dtype)
        w2 = w2.astype(compute_dtype)

    vmem = pl.BlockSpec(memory_space=pltpu.MemorySpace.VMEM)
    out = pl.pallas_call(
        _transform_kernel,
        out_shape=jax.ShapeDtypeStruct((R, d_out), x.dtype),
        in_specs=[vmem] * 5,
        out_specs=vmem,
    )(x_in, w1, b1, w2, b2)

    # Row order of `out` is (b, c) row-major, so this reshape is free.
    return out.reshape(B, C, dim[2], dim[3])


def reference_jax(x, params, dim):
    """Pure-JAX reference mirroring the PyTorch forward."""
    B, V, C = x.shape[0], x.shape[1], x.shape[2]
    d_in = dim[0] * dim[1]
    x_flat = x.reshape(B, V, C, d_in)
    acc = None
    for v in range(V):
        xv = x_flat[:, v]                                   # [B, C, d_in]
        h = jnp.maximum(xv @ params["w1"][v] + params["b1"][v], 0.0)
        y = jnp.maximum(h @ params["w2"][v] + params["b2"][v], 0.0)
        acc = y if acc is None else acc + y
    return acc.reshape(B, C, dim[2], dim[3]).astype(x.dtype)


if __name__ == "__main__":
    # Small shapes consistent with the module's forward.
    dim = (8, 8, 8, 8)          # d_in = 64, d_out = 64
    num_view = 4
    B, C = 2, 4
    d_in = dim[0] * dim[1]
    d_out = dim[2] * dim[3]

    key = jax.random.PRNGKey(0)
    kx, k1, k2, k3, k4 = jax.random.split(key, 5)

    # Per-view stacked params; PyTorch Linear is y = x @ W.T + b with
    # W:[out,in] — here W is stored pre-transposed as [in, out].
    params = {
        "w1": 0.1 * jax.random.normal(k1, (num_view, d_in, d_out), jnp.float32),
        "b1": 0.1 * jax.random.normal(k2, (num_view, d_out), jnp.float32),
        "w2": 0.1 * jax.random.normal(k3, (num_view, d_out, d_out), jnp.float32),
        "b2": 0.1 * jax.random.normal(k4, (num_view, d_out), jnp.float32),
    }

    x = jax.random.normal(kx, (B, num_view, C, dim[0], dim[1]), jnp.float32)

    out = transform_module_pallas(x, params, dim)
    out = jax.block_until_ready(out)

    ref = reference_jax(x, params, dim)
    assert out.shape == (B, C, dim[2], dim[3]), out.shape
    assert jnp.allclose(out, ref, atol=1e-5, rtol=1e-5), "mismatch vs reference"

    print("KERNEL_OK")
</pallas_src>

<mosaic_0001>
module attributes {stable_mosaic.version = 11 : i64} {
  func.func @_transform_kernel(%arg0: memref<4x8x64xf32, #tpu.memory_space<vmem>>, %arg1: memref<4x64x64xf32, #tpu.memory_space<vmem>>, %arg2: memref<4x1x64xf32, #tpu.memory_space<vmem>>, %arg3: memref<4x64x64xf32, #tpu.memory_space<vmem>>, %arg4: memref<4x1x64xf32, #tpu.memory_space<vmem>>, %arg5: memref<8x64xf32, #tpu.memory_space<vmem>>) attributes {dimension_semantics = [], scalar_prefetch = 0 : i64, scratch_operands = 0 : i64, tpu.core_type = #tpu.core_type<tc>} {
    %cst = arith.constant 0.000000e+00 : f32
    %0 = vector.broadcast %cst : f32 to vector<8x64xf32>
    %c0 = arith.constant 0 : index
    %c0_0 = arith.constant 0 : index
    %c0_1 = arith.constant 0 : index
    %1 = vector.load %arg0[%c0, %c0_0, %c0_1] : memref<4x8x64xf32, #tpu.memory_space<vmem>>, vector<1x8x64xf32>
    %2 = vector.shape_cast %1 : vector<1x8x64xf32> to vector<8x64xf32>
    %c0_2 = arith.constant 0 : index
    %c0_3 = arith.constant 0 : index
    %c0_4 = arith.constant 0 : index
    %3 = vector.load %arg1[%c0_2, %c0_3, %c0_4] : memref<4x64x64xf32, #tpu.memory_space<vmem>>, vector<1x64x64xf32>
    %4 = vector.shape_cast %3 : vector<1x64x64xf32> to vector<64x64xf32>
    %cst_5 = arith.constant dense<0.000000e+00> : vector<8x64xf32>
    %5 = tpu.matmul %2, %4, %cst_5 {dimension_numbers = #tpu.dot_dimension_numbers<[1], [0], [0], [1], [0, 0, 1, 1], [], []>} : vector<8x64xf32>, vector<64x64xf32>, vector<8x64xf32> -> vector<8x64xf32>
    %c0_6 = arith.constant 0 : index
    %c0_7 = arith.constant 0 : index
    %c0_8 = arith.constant 0 : index
    %6 = vector.load %arg2[%c0_6, %c0_7, %c0_8] : memref<4x1x64xf32, #tpu.memory_space<vmem>>, vector<1x1x64xf32>
    %7 = vector.shape_cast %6 : vector<1x1x64xf32> to vector<1x64xf32>
    %8 = vector.broadcast %7 : vector<1x64xf32> to vector<8x64xf32>
    %9 = arith.addf %5, %8 : vector<8x64xf32>
    %cst_9 = arith.constant 0.000000e+00 : f32
    %10 = vector.broadcast %cst_9 : f32 to vector<8x64xf32>
    %11 = arith.maximumf %9, %10 : vector<8x64xf32>
    %c0_10 = arith.constant 0 : index
    %c0_11 = arith.constant 0 : index
    %c0_12 = arith.constant 0 : index
    %12 = vector.load %arg3[%c0_10, %c0_11, %c0_12] : memref<4x64x64xf32, #tpu.memory_space<vmem>>, vector<1x64x64xf32>
    %13 = vector.shape_cast %12 : vector<1x64x64xf32> to vector<64x64xf32>
    %cst_13 = arith.constant dense<0.000000e+00> : vector<8x64xf32>
    %14 = tpu.matmul %11, %13, %cst_13 {dimension_numbers = #tpu.dot_dimension_numbers<[1], [0], [0], [1], [0, 0, 1, 1], [], []>} : vector<8x64xf32>, vector<64x64xf32>, vector<8x64xf32> -> vector<8x64xf32>
    %c0_14 = arith.constant 0 : index
    %c0_15 = arith.constant 0 : index
    %c0_16 = arith.constant 0 : index
    %15 = vector.load %arg4[%c0_14, %c0_15, %c0_16] : memref<4x1x64xf32, #tpu.memory_space<vmem>>, vector<1x1x64xf32>
    %16 = vector.shape_cast %15 : vector<1x1x64xf32> to vector<1x64xf32>
    %17 = vector.broadcast %16 : vector<1x64xf32> to vector<8x64xf32>
    %18 = arith.addf %14, %17 : vector<8x64xf32>
    %cst_17 = arith.constant 0.000000e+00 : f32
    %19 = vector.broadcast %cst_17 : f32 to vector<8x64xf32>
    %20 = arith.maximumf %18, %19 : vector<8x64xf32>
    %21 = arith.addf %0, %20 : vector<8x64xf32>
    %c1 = arith.constant 1 : index
    %c0_18 = arith.constant 0 : index
    %c0_19 = arith.constant 0 : index
    %22 = vector.load %arg0[%c1, %c0_18, %c0_19] : memref<4x8x64xf32, #tpu.memory_space<vmem>>, vector<1x8x64xf32>
    %23 = vector.shape_cast %22 : vector<1x8x64xf32> to vector<8x64xf32>
    %c1_20 = arith.constant 1 : index
    %c0_21 = arith.constant 0 : index
    %c0_22 = arith.constant 0 : index
    %24 = vector.load %arg1[%c1_20, %c0_21, %c0_22] : memref<4x64x64xf32, #tpu.memory_space<vmem>>, vector<1x64x64xf32>
    %25 = vector.shape_cast %24 : vector<1x64x64xf32> to vector<64x64xf32>
    %cst_23 = arith.constant dense<0.000000e+00> : vector<8x64xf32>
    %26 = tpu.matmul %23, %25, %cst_23 {dimension_numbers = #tpu.dot_dimension_numbers<[1], [0], [0], [1], [0, 0, 1, 1], [], []>} : vector<8x64xf32>, vector<64x64xf32>, vector<8x64xf32> -> vector<8x64xf32>
    %c1_24 = arith.constant 1 : index
    %c0_25 = arith.constant 0 : index
    %c0_26 = arith.constant 0 : index
    %27 = vector.load %arg2[%c1_24, %c0_25, %c0_26] : memref<4x1x64xf32, #tpu.memory_space<vmem>>, vector<1x1x64xf32>
    %28 = vector.shape_cast %27 : vector<1x1x64xf32> to vector<1x64xf32>
    %29 = vector.broadcast %28 : vector<1x64xf32> to vector<8x64xf32>
    %30 = arith.addf %26, %29 : vector<8x64xf32>
    %cst_27 = arith.constant 0.000000e+00 : f32
    %31 = vector.broadcast %cst_27 : f32 to vector<8x64xf32>
    %32 = arith.maximumf %30, %31 : vector<8x64xf32>
    %c1_28 = arith.constant 1 : index
    %c0_29 = arith.constant 0 : index
    %c0_30 = arith.constant 0 : index
    %33 = vector.load %arg3[%c1_28, %c0_29, %c0_30] : memref<4x64x64xf32, #tpu.memory_space<vmem>>, vector<1x64x64xf32>
    %34 = vector.shape_cast %33 : vector<1x64x64xf32> to vector<64x64xf32>
    %cst_31 = arith.constant dense<0.000000e+00> : vector<8x64xf32>
    %35 = tpu.matmul %32, %34, %cst_31 {dimension_numbers = #tpu.dot_dimension_numbers<[1], [0], [0], [1], [0, 0, 1, 1], [], []>} : vector<8x64xf32>, vector<64x64xf32>, vector<8x64xf32> -> vector<8x64xf32>
    %c1_32 = arith.constant 1 : index
    %c0_33 = arith.constant 0 : index
    %c0_34 = arith.constant 0 : index
    %36 = vector.load %arg4[%c1_32, %c0_33, %c0_34] : memref<4x1x64xf32, #tpu.memory_space<vmem>>, vector<1x1x64xf32>
    %37 = vector.shape_cast %36 : vector<1x1x64xf32> to vector<1x64xf32>
    %38 = vector.broadcast %37 : vector<1x64xf32> to vector<8x64xf32>
    %39 = arith.addf %35, %38 : vector<8x64xf32>
    %cst_35 = arith.constant 0.000000e+00 : f32
    %40 = vector.broadcast %cst_35 : f32 to vector<8x64xf32>
    %41 = arith.maximumf %39, %40 : vector<8x64xf32>
    %42 = arith.addf %21, %41 : vector<8x64xf32>
    %c2 = arith.constant 2 : index
    %c0_36 = arith.constant 0 : index
    %c0_37 = arith.constant 0 : index
    %43 = vector.load %arg0[%c2, %c0_36, %c0_37] : memref<4x8x64xf32, #tpu.memory_space<vmem>>, vector<1x8x64xf32>
    %44 = vector.shape_cast %43 : vector<1x8x64xf32> to vector<8x64xf32>
    %c2_38 = arith.constant 2 : index
    %c0_39 = arith.constant 0 : index
    %c0_40 = arith.constant 0 : index
    %45 = vector.load %arg1[%c2_38, %c0_39, %c0_40] : memref<4x64x64xf32, #tpu.memory_space<vmem>>, vector<1x64x64xf32>
    %46 = vector.shape_cast %45 : vector<1x64x64xf32> to vector<64x64xf32>
    %cst_41 = arith.constant dense<0.000000e+00> : vector<8x64xf32>
    %47 = tpu.matmul %44, %46, %cst_41 {dimension_numbers = #tpu.dot_dimension_numbers<[1], [0], [0], [1], [0, 0, 1, 1], [], []>} : vector<8x64xf32>, vector<64x64xf32>, vector<8x64xf32> -> vector<8x64xf32>
    %c2_42 = arith.constant 2 : index
    %c0_43 = arith.constant 0 : index
    %c0_44 = arith.constant 0 : index
    %48 = vector.load %arg2[%c2_42, %c0_43, %c0_44] : memref<4x1x64xf32, #tpu.memory_space<vmem>>, vector<1x1x64xf32>
    %49 = vector.shape_cast %48 : vector<1x1x64xf32> to vector<1x64xf32>
    %50 = vector.broadcast %49 : vector<1x64xf32> to vector<8x64xf32>
    %51 = arith.addf %47, %50 : vector<8x64xf32>
    %cst_45 = arith.constant 0.000000e+00 : f32
    %52 = vector.broadcast %cst_45 : f32 to vector<8x64xf32>
    %53 = arith.maximumf %51, %52 : vector<8x64xf32>
    %c2_46 = arith.constant 2 : index
    %c0_47 = arith.constant 0 : index
    %c0_48 = arith.constant 0 : index
    %54 = vector.load %arg3[%c2_46, %c0_47, %c0_48] : memref<4x64x64xf32, #tpu.memory_space<vmem>>, vector<1x64x64xf32>
    %55 = vector.shape_cast %54 : vector<1x64x64xf32> to vector<64x64xf32>
    %cst_49 = arith.constant dense<0.000000e+00> : vector<8x64xf32>
    %56 = tpu.matmul %53, %55, %cst_49 {dimension_numbers = #tpu.dot_dimension_numbers<[1], [0], [0], [1], [0, 0, 1, 1], [], []>} : vector<8x64xf32>, vector<64x64xf32>, vector<8x64xf32> -> vector<8x64xf32>
    %c2_50 = arith.constant 2 : index
    %c0_51 = arith.constant 0 : index
    %c0_52 = arith.constant 0 : index
    %57 = vector.load %arg4[%c2_50, %c0_51, %c0_52] : memref<4x1x64xf32, #tpu.memory_space<vmem>>, vector<1x1x64xf32>
    %58 = vector.shape_cast %57 : vector<1x1x64xf32> to vector<1x64xf32>
    %59 = vector.broadcast %58 : vector<1x64xf32> to vector<8x64xf32>
    %60 = arith.addf %56, %59 : vector<8x64xf32>
    %cst_53 = arith.constant 0.000000e+00 : f32
    %61 = vector.broadcast %cst_53 : f32 to vector<8x64xf32>
    %62 = arith.maximumf %60, %61 : vector<8x64xf32>
    %63 = arith.addf %42, %62 : vector<8x64xf32>
    %c3 = arith.constant 3 : index
    %c0_54 = arith.constant 0 : index
    %c0_55 = arith.constant 0 : index
    %64 = vector.load %arg0[%c3, %c0_54, %c0_55] : memref<4x8x64xf32, #tpu.memory_space<vmem>>, vector<1x8x64xf32>
    %65 = vector.shape_cast %64 : vector<1x8x64xf32> to vector<8x64xf32>
    %c3_56 = arith.constant 3 : index
    %c0_57 = arith.constant 0 : index
    %c0_58 = arith.constant 0 : index
    %66 = vector.load %arg1[%c3_56, %c0_57, %c0_58] : memref<4x64x64xf32, #tpu.memory_space<vmem>>, vector<1x64x64xf32>
    %67 = vector.shape_cast %66 : vector<1x64x64xf32> to vector<64x64xf32>
    %cst_59 = arith.constant dense<0.000000e+00> : vector<8x64xf32>
    %68 = tpu.matmul %65, %67, %cst_59 {dimension_numbers = #tpu.dot_dimension_numbers<[1], [0], [0], [1], [0, 0, 1, 1], [], []>} : vector<8x64xf32>, vector<64x64xf32>, vector<8x64xf32> -> vector<8x64xf32>
    %c3_60 = arith.constant 3 : index
    %c0_61 = arith.constant 0 : index
    %c0_62 = arith.constant 0 : index
    %69 = vector.load %arg2[%c3_60, %c0_61, %c0_62] : memref<4x1x64xf32, #tpu.memory_space<vmem>>, vector<1x1x64xf32>
    %70 = vector.shape_cast %69 : vector<1x1x64xf32> to vector<1x64xf32>
    %71 = vector.broadcast %70 : vector<1x64xf32> to vector<8x64xf32>
    %72 = arith.addf %68, %71 : vector<8x64xf32>
    %cst_63 = arith.constant 0.000000e+00 : f32
    %73 = vector.broadcast %cst_63 : f32 to vector<8x64xf32>
    %74 = arith.maximumf %72, %73 : vector<8x64xf32>
    %c3_64 = arith.constant 3 : index
    %c0_65 = arith.constant 0 : index
    %c0_66 = arith.constant 0 : index
    %75 = vector.load %arg3[%c3_64, %c0_65, %c0_66] : memref<4x64x64xf32, #tpu.memory_space<vmem>>, vector<1x64x64xf32>
    %76 = vector.shape_cast %75 : vector<1x64x64xf32> to vector<64x64xf32>
    %cst_67 = arith.constant dense<0.000000e+00> : vector<8x64xf32>
    %77 = tpu.matmul %74, %76, %cst_67 {dimension_numbers = #tpu.dot_dimension_numbers<[1], [0], [0], [1], [0, 0, 1, 1], [], []>} : vector<8x64xf32>, vector<64x64xf32>, vector<8x64xf32> -> vector<8x64xf32>
    %c3_68 = arith.constant 3 : index
    %c0_69 = arith.constant 0 : index
    %c0_70 = arith.constant 0 : index
    %78 = vector.load %arg4[%c3_68, %c0_69, %c0_70] : memref<4x1x64xf32, #tpu.memory_space<vmem>>, vector<1x1x64xf32>
    %79 = vector.shape_cast %78 : vector<1x1x64xf32> to vector<1x64xf32>
    %80 = vector.broadcast %79 : vector<1x64xf32> to vector<8x64xf32>
    %81 = arith.addf %77, %80 : vector<8x64xf32>
    %cst_71 = arith.constant 0.000000e+00 : f32
    %82 = vector.broadcast %cst_71 : f32 to vector<8x64xf32>
    %83 = arith.maximumf %81, %82 : vector<8x64xf32>
    %84 = arith.addf %63, %83 : vector<8x64xf32>
    %c0_72 = arith.constant 0 : index
    %c0_73 = arith.constant 0 : index
    %85 = vector.load %arg5[%c0_72, %c0_73] : memref<8x64xf32, #tpu.memory_space<vmem>>, vector<8x64xf32>
    tpu.vector_store %arg5[%c0_72, %c0_73], %84 {strides = array<i32>} : memref<8x64xf32, #tpu.memory_space<vmem>>, vector<8x64xf32>,
    return
  }
}

</mosaic_0001>

<llo_original>
// kernel: tpu_custom_call.1
$region0: #{tpu_custom_call.1}
  #allocation0 [shape = 'u32[]', space=smem, size = 0x4, offset = 0x4, fixed_abs, tag = 'smem constant byte address 0x4 - core index']
  #allocation1 [shape = 'u32[144,128]{1,0:T(1,128)}', space=vmem, size = 0x12000, scoped, tag = 'internal scratch']
  %s0 = inlined_call_operand.hbm [shape: f32[4,8,64], index: 0, kind: input, shape index: {}]
  %s1 = inlined_call_operand.hbm [shape: f32[4,64,64], index: 1, kind: input, shape index: {}]
  %s2 = inlined_call_operand.hbm [shape: f32[4,1,64], index: 2, kind: input, shape index: {}]
  %s3 = inlined_call_operand.hbm [shape: f32[4,64,64], index: 3, kind: input, shape index: {}]
  %s4 = inlined_call_operand.vmem [shape: f32[4,1,64], index: 4, kind: input, shape index: {}]
  %s5 = inlined_call_operand.hbm [shape: f32[8,64], index: 5, kind: output, shape index: {}]
  %s6 = sld [smem:[#allocation0]]
  $region46: #{tpu_custom_call.1} parent=0
    _
  %s8 = ssub.s32 1, %s6
  %s9 = scalar_select 0, %s8, %s6
  $region1: #{tpu_custom_call.1} parent=0
    #allocation2 [shape = 'u8[16384]{0}', space=vmem, size = 0x4000, scoped, tag = 'input window, operand 0, single buffered']
    #allocation3 [shape = 's32[1]{0}', space=sflag, size = 0x4, scoped, tag = 'scoped memory for tpu_custom_call.1']
    #allocation4 [shape = 's32[1]{0}', space=sflag, size = 0x4, scoped, tag = 'scoped memory for tpu_custom_call.1']
    #allocation5 [shape = 'u8[131072]{0}', space=vmem, size = 0x20000, scoped, tag = 'input window, operand 1, single buffered']
    #allocation6 [shape = 's32[1]{0}', space=sflag, size = 0x4, scoped, tag = 'scoped memory for tpu_custom_call.1']
    #allocation7 [shape = 'u8[2048]{0}', space=vmem, size = 0x800, scoped, tag = 'input window, operand 2, single buffered']
    #allocation8 [shape = 'u8[131072]{0}', space=vmem, size = 0x20000, scoped, tag = 'input window, operand 3, single buffered']
    #allocation9 [shape = 's32[1]{0}', space=sflag, size = 0x4, scoped, tag = 'scoped memory for tpu_custom_call.1']
    #allocation10 [shape = 'u8[4096]{0}', space=vmem, size = 0x1000, scoped, tag = 'output window, operand 0, single buffered']
    %10 = vsyncpa [#allocation3], 0
    %11 = vsyncpa [#allocation6], 0
    %12 = vsyncpa [#allocation9], 0
    %13 = vsyncpa [#allocation4], 0
    // Predicated region
    $region2: #{tpu_custom_call.1} parent=1 // pred_check
      _
    $region3: #{tpu_custom_call.1} parent=1 // pred_check_branch
      %15 = sbr.rel (0) target = $region5
    $region4: #{tpu_custom_call.1} parent=1 // pred_region
      %s17 = ssub.s32 512, 512
      %18 = vsyncadd [#allocation3], %s17
      %s19 = sshll.u32 [#allocation2], 4
      %s20 = int_to_ptr.vmem [resolvable:$true] %s19
      %25 = dma.hbm_to_vmem [thread:$0]  %s0, 512, %s20, [#allocation3], 128, 128, 8
    $region5: #{tpu_custom_call.1} parent=1 // pred_fallthru
      _
    // Predicated region
    $region6: #{tpu_custom_call.1} parent=1 // pred_check
      _
    $region7: #{tpu_custom_call.1} parent=1 // pred_check_branch
      %27 = sbr.rel (0) target = $region9
    $region8: #{tpu_custom_call.1} parent=1 // pred_region
      %s29 = ssub.s32 4096, 4096
      %30 = vsyncadd [#allocation6], %s29
      %s31 = sshll.u32 [#allocation5], 4
      %s32 = int_to_ptr.vmem [resolvable:$true] %s31
      %37 = dma.hbm_to_vmem [thread:$0]  %s1, 4096, %s32, [#allocation6], 128, 128, 8
    $region9: #{tpu_custom_call.1} parent=1 // pred_fallthru
      _
    // Predicated region
    $region10: #{tpu_custom_call.1} parent=1 // pred_check
      _
    $region11: #{tpu_custom_call.1} parent=1 // pred_check_branch
      %39 = sbr.rel (0) target = $region13
    $region12: #{tpu_custom_call.1} parent=1 // pred_region
      %s41 = ssub.s32 64, 64
      %42 = vsyncadd [#allocation6], %s41
      %s43 = sshll.u32 [#allocation7], 4
      %s44 = int_to_ptr.vmem [resolvable:$true] %s43
      %49 = dma.hbm_to_vmem [thread:$0]  %s2, 64, %s44, [#allocation6], 16, 16, 1
    $region13: #{tpu_custom_call.1} parent=1 // pred_fallthru
      _
    // Predicated region
    $region14: #{tpu_custom_call.1} parent=1 // pred_check
      _
    $region15: #{tpu_custom_call.1} parent=1 // pred_check_branch
      %51 = sbr.rel (0) target = $region17
    $region16: #{tpu_custom_call.1} parent=1 // pred_region
      %s53 = ssub.s32 4096, 4096
      %54 = vsyncadd [#allocation9], %s53
      %s55 = sshll.u32 [#allocation8], 4
      %s56 = int_to_ptr.vmem [resolvable:$true] %s55
      %61 = dma.hbm_to_vmem [thread:$0]  %s3, 4096, %s56, [#allocation9], 128, 128, 8
    $region17: #{tpu_custom_call.1} parent=1 // pred_fallthru
      _
    // Predicated region
    $region18: #{tpu_custom_call.1} parent=1 // pred_check
      _
    $region19: #{tpu_custom_call.1} parent=1 // pred_check_branch
      %63 = sbr.rel (0) target = $region21
    $region20: #{tpu_custom_call.1} parent=1 // pred_region
      _
    $region21: #{tpu_custom_call.1} parent=1 // pred_fallthru
      _
    // Predicated region
    $region22: #{tpu_custom_call.1} parent=1 // pred_check
      _
    $region23: #{tpu_custom_call.1} parent=1 // pred_check_branch
      %65 = sbr.rel (0) target = $region25
    $region24: #{tpu_custom_call.1} parent=1 // pred_region
      %66 = dma.done [#allocation3], 512
    $region25: #{tpu_custom_call.1} parent=1 // pred_fallthru
      _
    // Predicated region
    $region26: #{tpu_custom_call.1} parent=1 // pred_check
      _
    $region27: #{tpu_custom_call.1} parent=1 // pred_check_branch
      %68 = sbr.rel (0) target = $region29
    $region28: #{tpu_custom_call.1} parent=1 // pred_region
      %69 = dma.done [#allocation6], 4096
    $region29: #{tpu_custom_call.1} parent=1 // pred_fallthru
      _
    // Predicated region
    $region30: #{tpu_custom_call.1} parent=1 // pred_check
      _
    $region31: #{tpu_custom_call.1} parent=1 // pred_check_branch
      %71 = sbr.rel (0) target = $region33
    $region32: #{tpu_custom_call.1} parent=1 // pred_region
      %72 = dma.done [#allocation6], 64
    $region33: #{tpu_custom_call.1} parent=1 // pred_fallthru
      _
    // Predicated region
    $region34: #{tpu_custom_call.1} parent=1 // pred_check
      _
    $region35: #{tpu_custom_call.1} parent=1 // pred_check_branch
      %74 = sbr.rel (0) target = $region37
    $region36: #{tpu_custom_call.1} parent=1 // pred_region
      %75 = dma.done [#allocation9], 4096
    $region37: #{tpu_custom_call.1} parent=1 // pred_fallthru
      _
    %v76 = vld [vmem:[#allocation2] sm:$0xff]
    %v77 = vld [vmem:[#allocation5] sm:$0xff]
    %v78 = vld [vmem:[#allocation5 + $0x8] sm:$0xff]
    %v79 = vld [vmem:[#allocation5 + $0x10] sm:$0xff]
    %v80 = vld [vmem:[#allocation5 + $0x18] sm:$0xff]
    %v81 = vld [vmem:[#allocation5 + $0x20] sm:$0xff]
    %v82 = vld [vmem:[#allocation5 + $0x28] sm:$0xff]
    %v83 = vld [vmem:[#allocation5 + $0x30] sm:$0xff]
    %v84 = vld [vmem:[#allocation5 + $0x38] sm:$0xff]
    %v85 = vld [vmem:[#allocation7] sm:$0x1]
    %v87 = vlaneseq
    %v88 = vshrl.u32 %v87, 7
    %v89 = vsub.s32 0, %v88
    %v90 = vrot.slane %v85, %v89
    %vm92 = vcmask 523264
    %v94 = vsel %vm92, %v76, 0
    %96 = vmatprep.subr.mxu0 0.0
    %97 = vmatpush1.msra.mxu0 0.0
    %98 = vmatprep.subr.mxu0 0.0
    %99 = vmatpush1.msra.mxu0 0.0
    %100 = vmatprep.subr.mxu0 0.0
    %101 = vmatpush1.msra.mxu0 0.0
    %102 = vmatprep.subr.mxu0 0.0
    %103 = vmatpush1.msra.mxu0 0.0
    %104 = vmatprep.subr.mxu0 0.0
    %105 = vmatpush1.msra.mxu0 0.0
    %106 = vmatprep.subr.mxu0 0.0
    %107 = vmatpush1.msra.mxu0 0.0
    %108 = vmatprep.subr.mxu0 0.0
    %109 = vmatpush1.msra.mxu0 0.0
    %110 = vmatprep.subr.mxu0 0.0
    %111 = vmatpush1.msra.mxu0 0.0
    %112 = vmatprep.subr.mxu0 0.0
    %113 = vmatpush1.msra.mxu0 %v84
    %114 = vmatprep.subr.mxu0 0.0
    %115 = vmatpush1.msra.mxu0 %v83
    %116 = vmatprep.subr.mxu0 0.0
    %117 = vmatpush1.msra.mxu0 %v82
    %118 = vmatprep.subr.mxu0 0.0
    %119 = vmatpush1.msra.mxu0 %v81
    %120 = vmatprep.subr.mxu0 0.0
    %121 = vmatpush1.msra.mxu0 %v80
    %122 = vmatprep.subr.mxu0 0.0
    %123 = vmatpush1.msra.mxu0 %v79
    %124 = vmatprep.subr.mxu0 0.0
    %125 = vmatpush1.msra.mxu0 %v78
    %126 = vmatprep.subr.mxu0 0.0
    %127 = vmatpush1.msra.mxu0 %v77
    %128 = vmatprep.subr.mxu0 0.0
    %129 = vmatpush2.msra.mxu0 0.0
    %130 = vmatprep.subr.mxu0 0.0
    %131 = vmatpush2.msra.mxu0 0.0
    %132 = vmatprep.subr.mxu0 0.0
    %133 = vmatpush2.msra.mxu0 0.0
    %134 = vmatprep.subr.mxu0 0.0
    %135 = vmatpush2.msra.mxu0 0.0
    %136 = vmatprep.subr.mxu0 0.0
    %137 = vmatpush2.msra.mxu0 0.0
    %138 = vmatprep.subr.mxu0 0.0
    %139 = vmatpush2.msra.mxu0 0.0
    %140 = vmatprep.subr.mxu0 0.0
    %141 = vmatpush2.msra.mxu0 0.0
    %142 = vmatprep.subr.mxu0 0.0
    %143 = vmatpush2.msra.mxu0 0.0
    %144 = vmatprep.subr.mxu0 0.0
    %145 = vmatpush2.msra.mxu0 0.0
    %146 = vmatprep.subr.mxu0 0.0
    %147 = vmatpush2.msra.mxu0 0.0
    %148 = vmatprep.subr.mxu0 0.0
    %149 = vmatpush2.msra.mxu0 0.0
    %150 = vmatprep.subr.mxu0 0.0
    %151 = vmatpush2.msra.mxu0 0.0
    %152 = vmatprep.subr.mxu0 0.0
    %153 = vmatpush2.msra.mxu0 0.0
    %154 = vmatprep.subr.mxu0 0.0
    %155 = vmatpush2.msra.mxu0 0.0
    %156 = vmatprep.subr.mxu0 0.0
    %157 = vmatpush2.msra.mxu0 0.0
    %158 = vmatprep.subr.mxu0 0.0
    %159 = vmatpush2.msra.mxu0 0.0
    %160 = vmatprep.mubr.f32.mxu0 0.0
    %161 = vmatmul.mubr.f32.gmra.mxu0 %v94
    %v162 = vpop.f32.mrf.mxu0
    %v163 = vadd.f32 %v90, %v162
    %v164 = vpop.f32.mrf.mxu0
    %165 = vdwg.mxu0
    %v166 = vmax.f32 %v163, 0.0
    %v167 = vld [vmem:[#allocation8] sm:$0xff]
    %v168 = vld [vmem:[#allocation8 + $0x8] sm:$0xff]
    %v169 = vld [vmem:[#allocation8 + $0x10] sm:$0xff]
    %v170 = vld [vmem:[#allocation8 + $0x18] sm:$0xff]
    %v171 = vld [vmem:[#allocation8 + $0x20] sm:$0xff]
    %v172 = vld [vmem:[#allocation8 + $0x28] sm:$0xff]
    %v173 = vld [vmem:[#allocation8 + $0x30] sm:$0xff]
    %v174 = vld [vmem:[#allocation8 + $0x38] sm:$0xff]
    %v175 = vld [vmem:[%s4] sm:$0x1]
    %v177 = vlaneseq
    %v178 = vshrl.u32 %v177, 7
    %v179 = vsub.s32 0, %v178
    %v180 = vrot.slane %v175, %v179
    %v183 = vsel %vm92, %v166, 0
    %185 = vmatprep.subr.mxu0 0.0
    %186 = vmatpush1.msra.mxu0 0.0
    %187 = vmatprep.subr.mxu0 0.0
    %188 = vmatpush1.msra.mxu0 0.0
    %189 = vmatprep.subr.mxu0 0.0
    %190 = vmatpush1.msra.mxu0 0.0
    %191 = vmatprep.subr.mxu0 0.0
    %192 = vmatpush1.msra.mxu0 0.0
    %193 = vmatprep.subr.mxu0 0.0
    %194 = vmatpush1.msra.mxu0 0.0
    %195 = vmatprep.subr.mxu0 0.0
    %196 = vmatpush1.msra.mxu0 0.0
    %197 = vmatprep.subr.mxu0 0.0
    %198 = vmatpush1.msra.mxu0 0.0
    %199 = vmatprep.subr.mxu0 0.0
    %200 = vmatpush1.msra.mxu0 0.0
    %201 = vmatprep.subr.mxu0 0.0
    %202 = vmatpush1.msra.mxu0 %v174
    %203 = vmatprep.subr.mxu0 0.0
    %204 = vmatpush1.msra.mxu0 %v173
    %205 = vmatprep.subr.mxu0 0.0
    %206 = vmatpush1.msra.mxu0 %v172
    %207 = vmatprep.subr.mxu0 0.0
    %208 = vmatpush1.msra.mxu0 %v171
    %209 = vmatprep.subr.mxu0 0.0
    %210 = vmatpush1.msra.mxu0 %v170
    %211 = vmatprep.subr.mxu0 0.0
    %212 = vmatpush1.msra.mxu0 %v169
    %213 = vmatprep.subr.mxu0 0.0
    %214 = vmatpush1.msra.mxu0 %v168
    %215 = vmatprep.subr.mxu0 0.0
    %216 = vmatpush1.msra.mxu0 %v167
    %217 = vmatprep.subr.mxu0 0.0
    %218 = vmatpush2.msra.mxu0 0.0
    %219 = vmatprep.subr.mxu0 0.0
    %220 = vmatpush2.msra.mxu0 0.0
    %221 = vmatprep.subr.mxu0 0.0
    %222 = vmatpush2.msra.mxu0 0.0
    %223 = vmatprep.subr.mxu0 0.0
    %224 = vmatpush2.msra.mxu0 0.0
    %225 = vmatprep.subr.mxu0 0.0
    %226 = vmatpush2.msra.mxu0 0.0
    %227 = vmatprep.subr.mxu0 0.0
    %228 = vmatpush2.msra.mxu0 0.0
    %229 = vmatprep.subr.mxu0 0.0
    %230 = vmatpush2.msra.mxu0 0.0
    %231 = vmatprep.subr.mxu0 0.0
    %232 = vmatpush2.msra.mxu0 0.0
    %233 = vmatprep.subr.mxu0 0.0
    %234 = vmatpush2.msra.mxu0 0.0
    %235 = vmatprep.subr.mxu0 0.0
    %236 = vmatpush2.msra.mxu0 0.0
    %237 = vmatprep.subr.mxu0 0.0
    %238 = vmatpush2.msra.mxu0 0.0
    %239 = vmatprep.subr.mxu0 0.0
    %240 = vmatpush2.msra.mxu0 0.0
    %241 = vmatprep.subr.mxu0 0.0
    %242 = vmatpush2.msra.mxu0 0.0
    %243 = vmatprep.subr.mxu0 0.0
    %244 = vmatpush2.msra.mxu0 0.0
    %245 = vmatprep.subr.mxu0 0.0
    %246 = vmatpush2.msra.mxu0 0.0
    %247 = vmatprep.subr.mxu0 0.0
    %248 = vmatpush2.msra.mxu0 0.0
    %249 = vmatprep.mubr.f32.mxu0 0.0
    %250 = vmatmul.mubr.f32.gmra.mxu0 %v183
    %v251 = vpop.f32.mrf.mxu0
    %v252 = vadd.f32 %v180, %v251
    %v253 = vpop.f32.mrf.mxu0
    %254 = vdwg.mxu0
    %v255 = vmax.f32 %v252, 0.0
    %v256 = vadd.f32 %v255, 0.0
    %s257 = scalar_lea.vmem [#allocation2], 8
    %v258 = vld [vmem:[%s257] sm:$0xff]
    %s259 = scalar_lea.vmem [#allocation5], 64
    %v260 = vld [vmem:[%s259] sm:$0xff]
    %v261 = vld [vmem:[%s259 + $0x8] sm:$0xff]
    %v262 = vld [vmem:[%s259 + $0x10] sm:$0xff]
    %v263 = vld [vmem:[%s259 + $0x18] sm:$0xff]
    %v264 = vld [vmem:[%s259 + $0x20] sm:$0xff]
    %v265 = vld [vmem:[%s259 + $0x28] sm:$0xff]
    %v266 = vld [vmem:[%s259 + $0x30] sm:$0xff]
    %v267 = vld [vmem:[%s259 + $0x38] sm:$0xff]
    %s268 = scalar_lea.vmem [#allocation7], 1
    %v269 = vld [vmem:[%s268] sm:$0x1]
    %v271 = vlaneseq
    %v272 = vshrl.u32 %v271, 7
    %v273 = vsub.s32 0, %v272
    %v274 = vrot.slane %v269, %v273
    %v277 = vsel %vm92, %v258, 0
    %279 = vmatprep.subr.mxu0 0.0
    %280 = vmatpush1.msra.mxu0 0.0
    %281 = vmatprep.subr.mxu0 0.0
    %282 = vmatpush1.msra.mxu0 0.0
    %283 = vmatprep.subr.mxu0 0.0
    %284 = vmatpush1.msra.mxu0 0.0
    %285 = vmatprep.subr.mxu0 0.0
    %286 = vmatpush1.msra.mxu0 0.0
    %287 = vmatprep.subr.mxu0 0.0
    %288 = vmatpush1.msra.mxu0 0.0
    %289 = vmatprep.subr.mxu0 0.0
    %290 = vmatpush1.msra.mxu0 0.0
    %291 = vmatprep.subr.mxu0 0.0
    %292 = vmatpush1.msra.mxu0 0.0
    %293 = vmatprep.subr.mxu0 0.0
    %294 = vmatpush1.msra.mxu0 0.0
    %295 = vmatprep.subr.mxu0 0.0
    %296 = vmatpush1.msra.mxu0 %v267
    %297 = vmatprep.subr.mxu0 0.0
    %298 = vmatpush1.msra.mxu0 %v266
    %299 = vmatprep.subr.mxu0 0.0
    %300 = vmatpush1.msra.mxu0 %v265
    %301 = vmatprep.subr.mxu0 0.0
    %302 = vmatpush1.msra.mxu0 %v264
    %303 = vmatprep.subr.mxu0 0.0
    %304 = vmatpush1.msra.mxu0 %v263
    %305 = vmatprep.subr.mxu0 0.0
    %306 = vmatpush1.msra.mxu0 %v262
    %307 = vmatprep.subr.mxu0 0.0
    %308 = vmatpush1.msra.mxu0 %v261
    %309 = vmatprep.subr.mxu0 0.0
    %310 = vmatpush1.msra.mxu0 %v260
    %311 = vmatprep.subr.mxu0 0.0
    %312 = vmatpush2.msra.mxu0 0.0
    %313 = vmatprep.subr.mxu0 0.0
    %314 = vmatpush2.msra.mxu0 0.0
    %315 = vmatprep.subr.mxu0 0.0
    %316 = vmatpush2.msra.mxu0 0.0
    %317 = vmatprep.subr.mxu0 0.0
    %318 = vmatpush2.msra.mxu0 0.0
    %319 = vmatprep.subr.mxu0 0.0
    %320 = vmatpush2.msra.mxu0 0.0
    %321 = vmatprep.subr.mxu0 0.0
    %322 = vmatpush2.msra.mxu0 0.0
    %323 = vmatprep.subr.mxu0 0.0
    %324 = vmatpush2.msra.mxu0 0.0
    %325 = vmatprep.subr.mxu0 0.0
    %326 = vmatpush2.msra.mxu0 0.0
    %327 = vmatprep.subr.mxu0 0.0
    %328 = vmatpush2.msra.mxu0 0.0
    %329 = vmatprep.subr.mxu0 0.0
    %330 = vmatpush2.msra.mxu0 0.0
    %331 = vmatprep.subr.mxu0 0.0
    %332 = vmatpush2.msra.mxu0 0.0
    %333 = vmatprep.subr.mxu0 0.0
    %334 = vmatpush2.msra.mxu0 0.0
    %335 = vmatprep.subr.mxu0 0.0
    %336 = vmatpush2.msra.mxu0 0.0
    %337 = vmatprep.subr.mxu0 0.0
    %338 = vmatpush2.msra.mxu0 0.0
    %339 = vmatprep.subr.mxu0 0.0
    %340 = vmatpush2.msra.mxu0 0.0
    %341 = vmatprep.subr.mxu0 0.0
    %342 = vmatpush2.msra.mxu0 0.0
    %343 = vmatprep.mubr.f32.mxu0 0.0
    %344 = vmatmul.mubr.f32.gmra.mxu0 %v277
    %v345 = vpop.f32.mrf.mxu0
    %v346 = vadd.f32 %v274, %v345
    %v347 = vpop.f32.mrf.mxu0
    %348 = vdwg.mxu0
    %v349 = vmax.f32 %v346, 0.0
    %s350 = scalar_lea.vmem [#allocation8], 64
    %v351 = vld [vmem:[%s350] sm:$0xff]
    %v352 = vld [vmem:[%s350 + $0x8] sm:$0xff]
    %v353 = vld [vmem:[%s350 + $0x10] sm:$0xff]
    %v354 = vld [vmem:[%s350 + $0x18] sm:$0xff]
    %v355 = vld [vmem:[%s350 + $0x20] sm:$0xff]
    %v356 = vld [vmem:[%s350 + $0x28] sm:$0xff]
    %v357 = vld [vmem:[%s350 + $0x30] sm:$0xff]
    %v358 = vld [vmem:[%s350 + $0x38] sm:$0xff]
    %s359 = scalar_lea.vmem %s4, 1
    %v360 = vld [vmem:[%s359] sm:$0x1]
    %v362 = vlaneseq
    %v363 = vshrl.u32 %v362, 7
    %v364 = vsub.s32 0, %v363
    %v365 = vrot.slane %v360, %v364
    %v368 = vsel %vm92, %v349, 0
    %370 = vmatprep.subr.mxu0 0.0
    %371 = vmatpush1.msra.mxu0 0.0
    %372 = vmatprep.subr.mxu0 0.0
    %373 = vmatpush1.msra.mxu0 0.0
    %374 = vmatprep.subr.mxu0 0.0
    %375 = vmatpush1.msra.mxu0 0.0
    %376 = vmatprep.subr.mxu0 0.0
    %377 = vmatpush1.msra.mxu0 0.0
    %378 = vmatprep.subr.mxu0 0.0
    %379 = vmatpush1.msra.mxu0 0.0
    %380 = vmatprep.subr.mxu0 0.0
    %381 = vmatpush1.msra.mxu0 0.0
    %382 = vmatprep.subr.mxu0 0.0
    %383 = vmatpush1.msra.mxu0 0.0
    %384 = vmatprep.subr.mxu0 0.0
    %385 = vmatpush1.msra.mxu0 0.0
    %386 = vmatprep.subr.mxu0 0.0
    %387 = vmatpush1.msra.mxu0 %v358
    %388 = vmatprep.subr.mxu0 0.0
    %389 = vmatpush1.msra.mxu0 %v357
    %390 = vmatprep.subr.mxu0 0.0
    %391 = vmatpush1.msra.mxu0 %v356
    %392 = vmatprep.subr.mxu0 0.0
    %393 = vmatpush1.msra.mxu0 %v355
    %394 = vmatprep.subr.mxu0 0.0
    %395 = vmatpush1.msra.mxu0 %v354
    %396 = vmatprep.subr.mxu0 0.0
    %397 = vmatpush1.msra.mxu0 %v353
    %398 = vmatprep.subr.mxu0 0.0
    %399 = vmatpush1.msra.mxu0 %v352
    %400 = vmatprep.subr.mxu0 0.0
    %401 = vmatpush1.msra.mxu0 %v351
    %402 = vmatprep.subr.mxu0 0.0
    %403 = vmatpush2.msra.mxu0 0.0
    %404 = vmatprep.subr.mxu0 0.0
    %405 = vmatpush2.msra.mxu0 0.0
    %406 = vmatprep.subr.mxu0 0.0
    %407 = vmatpush2.msra.mxu0 0.0
    %408 = vmatprep.subr.mxu0 0.0
    %409 = vmatpush2.msra.mxu0 0.0
    %410 = vmatprep.subr.mxu0 0.0
    %411 = vmatpush2.msra.mxu0 0.0
    %412 = vmatprep.subr.mxu0 0.0
    %413 = vmatpush2.msra.mxu0 0.0
    %414 = vmatprep.subr.mxu0 0.0
    %415 = vmatpush2.msra.mxu0 0.0
    %416 = vmatprep.subr.mxu0 0.0
    %417 = vmatpush2.msra.mxu0 0.0
    %418 = vmatprep.subr.mxu0 0.0
    %419 = vmatpush2.msra.mxu0 0.0
    %420 = vmatprep.subr.mxu0 0.0
    %421 = vmatpush2.msra.mxu0 0.0
    %422 = vmatprep.subr.mxu0 0.0
    %423 = vmatpush2.msra.mxu0 0.0
    %424 = vmatprep.subr.mxu0 0.0
    %425 = vmatpush2.msra.mxu0 0.0
    %426 = vmatprep.subr.mxu0 0.0
    %427 = vmatpush2.msra.mxu0 0.0
    %428 = vmatprep.subr.mxu0 0.0
    %429 = vmatpush2.msra.mxu0 0.0
    %430 = vmatprep.subr.mxu0 0.0
    %431 = vmatpush2.msra.mxu0 0.0
    %432 = vmatprep.subr.mxu0 0.0
    %433 = vmatpush2.msra.mxu0 0.0
    %434 = vmatprep.mubr.f32.mxu0 0.0
    %435 = vmatmul.mubr.f32.gmra.mxu0 %v368
    %v436 = vpop.f32.mrf.mxu0
    %v437 = vadd.f32 %v365, %v436
    %v438 = vpop.f32.mrf.mxu0
    %439 = vdwg.mxu0
    %v440 = vmax.f32 %v437, 0.0
    %v441 = vadd.f32 %v256, %v440
    %s442 = scalar_lea.vmem [#allocation2], 16
    %v443 = vld [vmem:[%s442] sm:$0xff]
    %s444 = scalar_lea.vmem [#allocation5], 128
    %v445 = vld [vmem:[%s444] sm:$0xff]
    %v446 = vld [vmem:[%s444 + $0x8] sm:$0xff]
    %v447 = vld [vmem:[%s444 + $0x10] sm:$0xff]
    %v448 = vld [vmem:[%s444 + $0x18] sm:$0xff]
    %v449 = vld [vmem:[%s444 + $0x20] sm:$0xff]
    %v450 = vld [vmem:[%s444 + $0x28] sm:$0xff]
    %v451 = vld [vmem:[%s444 + $0x30] sm:$0xff]
    %v452 = vld [vmem:[%s444 + $0x38] sm:$0xff]
    %s453 = scalar_lea.vmem [#allocation7], 2
    %v454 = vld [vmem:[%s453] sm:$0x1]
    %v456 = vlaneseq
    %v457 = vshrl.u32 %v456, 7
    %v458 = vsub.s32 0, %v457
    %v459 = vrot.slane %v454, %v458
    %v462 = vsel %vm92, %v443, 0
    %464 = vmatprep.subr.mxu0 0.0
    %465 = vmatpush1.msra.mxu0 0.0
    %466 = vmatprep.subr.mxu0 0.0
    %467 = vmatpush1.msra.mxu0 0.0
    %468 = vmatprep.subr.mxu0 0.0
    %469 = vmatpush1.msra.mxu0 0.0
    %470 = vmatprep.subr.mxu0 0.0
    %471 = vmatpush1.msra.mxu0 0.0
    %472 = vmatprep.subr.mxu0 0.0
    %473 = vmatpush1.msra.mxu0 0.0
    %474 = vmatprep.subr.mxu0 0.0
    %475 = vmatpush1.msra.mxu0 0.0
    %476 = vmatprep.subr.mxu0 0.0
    %477 = vmatpush1.msra.mxu0 0.0
    %478 = vmatprep.subr.mxu0 0.0
    %479 = vmatpush1.msra.mxu0 0.0
    %480 = vmatprep.subr.mxu0 0.0
    %481 = vmatpush1.msra.mxu0 %v452
    %482 = vmatprep.subr.mxu0 0.0
    %483 = vmatpush1.msra.mxu0 %v451
    %484 = vmatprep.subr.mxu0 0.0
    %485 = vmatpush1.msra.mxu0 %v450
    %486 = vmatprep.subr.mxu0 0.0
    %487 = vmatpush1.msra.mxu0 %v449
    %488 = vmatprep.subr.mxu0 0.0
    %489 = vmatpush1.msra.mxu0 %v448
    %490 = vmatprep.subr.mxu0 0.0
    %491 = vmatpush1.msra.mxu0 %v447
    %492 = vmatprep.subr.mxu0 0.0
    %493 = vmatpush1.msra.mxu0 %v446
    %494 = vmatprep.subr.mxu0 0.0
    %495 = vmatpush1.msra.mxu0 %v445
    %496 = vmatprep.subr.mxu0 0.0
    %497 = vmatpush2.msra.mxu0 0.0
    %498 = vmatprep.subr.mxu0 0.0
    %499 = vmatpush2.msra.mxu0 0.0
    %500 = vmatprep.subr.mxu0 0.0
    %501 = vmatpush2.msra.mxu0 0.0
    %502 = vmatprep.subr.mxu0 0.0
    %503 = vmatpush2.msra.mxu0 0.0
    %504 = vmatprep.subr.mxu0 0.0
    %505 = vmatpush2.msra.mxu0 0.0
    %506 = vmatprep.subr.mxu0 0.0
    %507 = vmatpush2.msra.mxu0 0.0
    %508 = vmatprep.subr.mxu0 0.0
    %509 = vmatpush2.msra.mxu0 0.0
    %510 = vmatprep.subr.mxu0 0.0
    %511 = vmatpush2.msra.mxu0 0.0
    %512 = vmatprep.subr.mxu0 0.0
    %513 = vmatpush2.msra.mxu0 0.0
    %514 = vmatprep.subr.mxu0 0.0
    %515 = vmatpush2.msra.mxu0 0.0
    %516 = vmatprep.subr.mxu0 0.0
    %517 = vmatpush2.msra.mxu0 0.0
    %518 = vmatprep.subr.mxu0 0.0
    %519 = vmatpush2.msra.mxu0 0.0
    %520 = vmatprep.subr.mxu0 0.0
    %521 = vmatpush2.msra.mxu0 0.0
    %522 = vmatprep.subr.mxu0 0.0
    %523 = vmatpush2.msra.mxu0 0.0
    %524 = vmatprep.subr.mxu0 0.0
    %525 = vmatpush2.msra.mxu0 0.0
    %526 = vmatprep.subr.mxu0 0.0
    %527 = vmatpush2.msra.mxu0 0.0
    %528 = vmatprep.mubr.f32.mxu0 0.0
    %529 = vmatmul.mubr.f32.gmra.mxu0 %v462
    %v530 = vpop.f32.mrf.mxu0
    %v531 = vadd.f32 %v459, %v530
    %v532 = vpop.f32.mrf.mxu0
    %533 = vdwg.mxu0
    %v534 = vmax.f32 %v531, 0.0
    %s535 = scalar_lea.vmem [#allocation8], 128
    %v536 = vld [vmem:[%s535] sm:$0xff]
    %v537 = vld [vmem:[%s535 + $0x8] sm:$0xff]
    %v538 = vld [vmem:[%s535 + $0x10] sm:$0xff]
    %v539 = vld [vmem:[%s535 + $0x18] sm:$0xff]
    %v540 = vld [vmem:[%s535 + $0x20] sm:$0xff]
    %v541 = vld [vmem:[%s535 + $0x28] sm:$0xff]
    %v542 = vld [vmem:[%s535 + $0x30] sm:$0xff]
    %v543 = vld [vmem:[%s535 + $0x38] sm:$0xff]
    %s544 = scalar_lea.vmem %s4, 2
    %v545 = vld [vmem:[%s544] sm:$0x1]
    %v547 = vlaneseq
    %v548 = vshrl.u32 %v547, 7
    %v549 = vsub.s32 0, %v548
    %v550 = vrot.slane %v545, %v549
    %v553 = vsel %vm92, %v534, 0
    %555 = vmatprep.subr.mxu0 0.0
    %556 = vmatpush1.msra.mxu0 0.0
    %557 = vmatprep.subr.mxu0 0.0
    %558 = vmatpush1.msra.mxu0 0.0
    %559 = vmatprep.subr.mxu0 0.0
    %560 = vmatpush1.msra.mxu0 0.0
    %561 = vmatprep.subr.mxu0 0.0
    %562 = vmatpush1.msra.mxu0 0.0
    %563 = vmatprep.subr.mxu0 0.0
    %564 = vmatpush1.msra.mxu0 0.0
    %565 = vmatprep.subr.mxu0 0.0
    %566 = vmatpush1.msra.mxu0 0.0
    %567 = vmatprep.subr.mxu0 0.0
    %568 = vmatpush1.msra.mxu0 0.0
    %569 = vmatprep.subr.mxu0 0.0
    %570 = vmatpush1.msra.mxu0 0.0
    %571 = vmatprep.subr.mxu0 0.0
    %572 = vmatpush1.msra.mxu0 %v543
    %573 = vmatprep.subr.mxu0 0.0
    %574 = vmatpush1.msra.mxu0 %v542
    %575 = vmatprep.subr.mxu0 0.0
    %576 = vmatpush1.msra.mxu0 %v541
    %577 = vmatprep.subr.mxu0 0.0
    %578 = vmatpush1.msra.mxu0 %v540
    %579 = vmatprep.subr.mxu0 0.0
    %580 = vmatpush1.msra.mxu0 %v539
    %581 = vmatprep.subr.mxu0 0.0
    %582 = vmatpush1.msra.mxu0 %v538
    %583 = vmatprep.subr.mxu0 0.0
    %584 = vmatpush1.msra.mxu0 %v537
    %585 = vmatprep.subr.mxu0 0.0
    %586 = vmatpush1.msra.mxu0 %v536
    %587 = vmatprep.subr.mxu0 0.0
    %588 = vmatpush2.msra.mxu0 0.0
    %589 = vmatprep.subr.mxu0 0.0
    %590 = vmatpush2.msra.mxu0 0.0
    %591 = vmatprep.subr.mxu0 0.0
    %592 = vmatpush2.msra.mxu0 0.0
    %593 = vmatprep.subr.mxu0 0.0
    %594 = vmatpush2.msra.mxu0 0.0
    %595 = vmatprep.subr.mxu0 0.0
    %596 = vmatpush2.msra.mxu0 0.0
    %597 = vmatprep.subr.mxu0 0.0
    %598 = vmatpush2.msra.mxu0 0.0
    %599 = vmatprep.subr.mxu0 0.0
    %600 = vmatpush2.msra.mxu0 0.0
    %601 = vmatprep.subr.mxu0 0.0
    %602 = vmatpush2.msra.mxu0 0.0
    %603 = vmatprep.subr.mxu0 0.0
    %604 = vmatpush2.msra.mxu0 0.0
    %605 = vmatprep.subr.mxu0 0.0
    %606 = vmatpush2.msra.mxu0 0.0
    %607 = vmatprep.subr.mxu0 0.0
    %608 = vmatpush2.msra.mxu0 0.0
    %609 = vmatprep.subr.mxu0 0.0
    %610 = vmatpush2.msra.mxu0 0.0
    %611 = vmatprep.subr.mxu0 0.0
    %612 = vmatpush2.msra.mxu0 0.0
    %613 = vmatprep.subr.mxu0 0.0
    %614 = vmatpush2.msra.mxu0 0.0
    %615 = vmatprep.subr.mxu0 0.0
    %616 = vmatpush2.msra.mxu0 0.0
    %617 = vmatprep.subr.mxu0 0.0
    %618 = vmatpush2.msra.mxu0 0.0
    %619 = vmatprep.mubr.f32.mxu0 0.0
    %620 = vmatmul.mubr.f32.gmra.mxu0 %v553
    %v621 = vpop.f32.mrf.mxu0
    %v622 = vadd.f32 %v550, %v621
    %v623 = vpop.f32.mrf.mxu0
    %624 = vdwg.mxu0
    %v625 = vmax.f32 %v622, 0.0
    %v626 = vadd.f32 %v441, %v625
    %s627 = scalar_lea.vmem [#allocation2], 24
    %v628 = vld [vmem:[%s627] sm:$0xff]
    %s629 = scalar_lea.vmem [#allocation5], 192
    %v630 = vld [vmem:[%s629] sm:$0xff]
    %v631 = vld [vmem:[%s629 + $0x8] sm:$0xff]
    %v632 = vld [vmem:[%s629 + $0x10] sm:$0xff]
    %v633 = vld [vmem:[%s629 + $0x18] sm:$0xff]
    %v634 = vld [vmem:[%s629 + $0x20] sm:$0xff]
    %v635 = vld [vmem:[%s629 + $0x28] sm:$0xff]
    %v636 = vld [vmem:[%s629 + $0x30] sm:$0xff]
    %v637 = vld [vmem:[%s629 + $0x38] sm:$0xff]
    %s638 = scalar_lea.vmem [#allocation7], 3
    %v639 = vld [vmem:[%s638] sm:$0x1]
    %v641 = vlaneseq
    %v642 = vshrl.u32 %v641, 7
    %v643 = vsub.s32 0, %v642
    %v644 = vrot.slane %v639, %v643
    %v647 = vsel %vm92, %v628, 0
    %649 = vmatprep.subr.mxu0 0.0
    %650 = vmatpush1.msra.mxu0 0.0
    %651 = vmatprep.subr.mxu0 0.0
    %652 = vmatpush1.msra.mxu0 0.0
    %653 = vmatprep.subr.mxu0 0.0
    %654 = vmatpush1.msra.mxu0 0.0
    %655 = vmatprep.subr.mxu0 0.0
    %656 = vmatpush1.msra.mxu0 0.0
    %657 = vmatprep.subr.mxu0 0.0
    %658 = vmatpush1.msra.mxu0 0.0
    %659 = vmatprep.subr.mxu0 0.0
    %660 = vmatpush1.msra.mxu0 0.0
    %661 = vmatprep.subr.mxu0 0.0
    %662 = vmatpush1.msra.mxu0 0.0
    %663 = vmatprep.subr.mxu0 0.0
    %664 = vmatpush1.msra.mxu0 0.0
    %665 = vmatprep.subr.mxu0 0.0
    %666 = vmatpush1.msra.mxu0 %v637
    %667 = vmatprep.subr.mxu0 0.0
    %668 = vmatpush1.msra.mxu0 %v636
    %669 = vmatprep.subr.mxu0 0.0
    %670 = vmatpush1.msra.mxu0 %v635
    %671 = vmatprep.subr.mxu0 0.0
    %672 = vmatpush1.msra.mxu0 %v634
    %673 = vmatprep.subr.mxu0 0.0
    %674 = vmatpush1.msra.mxu0 %v633
    %675 = vmatprep.subr.mxu0 0.0
    %676 = vmatpush1.msra.mxu0 %v632
    %677 = vmatprep.subr.mxu0 0.0
    %678 = vmatpush1.msra.mxu0 %v631
    %679 = vmatprep.subr.mxu0 0.0
    %680 = vmatpush1.msra.mxu0 %v630
    %681 = vmatprep.subr.mxu0 0.0
    %682 = vmatpush2.msra.mxu0 0.0
    %683 = vmatprep.subr.mxu0 0.0
    %684 = vmatpush2.msra.mxu0 0.0
    %685 = vmatprep.subr.mxu0 0.0
    %686 = vmatpush2.msra.mxu0 0.0
    %687 = vmatprep.subr.mxu0 0.0
    %688 = vmatpush2.msra.mxu0 0.0
    %689 = vmatprep.subr.mxu0 0.0
    %690 = vmatpush2.msra.mxu0 0.0
    %691 = vmatprep.subr.mxu0 0.0
    %692 = vmatpush2.msra.mxu0 0.0
    %693 = vmatprep.subr.mxu0 0.0
    %694 = vmatpush2.msra.mxu0 0.0
    %695 = vmatprep.subr.mxu0 0.0
    %696 = vmatpush2.msra.mxu0 0.0
    %697 = vmatprep.subr.mxu0 0.0
    %698 = vmatpush2.msra.mxu0 0.0
    %699 = vmatprep.subr.mxu0 0.0
    %700 = vmatpush2.msra.mxu0 0.0
    %701 = vmatprep.subr.mxu0 0.0
    %702 = vmatpush2.msra.mxu0 0.0
    %703 = vmatprep.subr.mxu0 0.0
    %704 = vmatpush2.msra.mxu0 0.0
    %705 = vmatprep.subr.mxu0 0.0
    %706 = vmatpush2.msra.mxu0 0.0
    %707 = vmatprep.subr.mxu0 0.0
    %708 = vmatpush2.msra.mxu0 0.0
    %709 = vmatprep.subr.mxu0 0.0
    %710 = vmatpush2.msra.mxu0 0.0
    %711 = vmatprep.subr.mxu0 0.0
    %712 = vmatpush2.msra.mxu0 0.0
    %713 = vmatprep.mubr.f32.mxu0 0.0
    %714 = vmatmul.mubr.f32.gmra.mxu0 %v647
    %v715 = vpop.f32.mrf.mxu0
    %v716 = vadd.f32 %v644, %v715
    %v717 = vpop.f32.mrf.mxu0
    %718 = vdwg.mxu0
    %v719 = vmax.f32 %v716, 0.0
    %s720 = scalar_lea.vmem [#allocation8], 192
    %v721 = vld [vmem:[%s720] sm:$0xff]
    %v722 = vld [vmem:[%s720 + $0x8] sm:$0xff]
    %v723 = vld [vmem:[%s720 + $0x10] sm:$0xff]
    %v724 = vld [vmem:[%s720 + $0x18] sm:$0xff]
    %v725 = vld [vmem:[%s720 + $0x20] sm:$0xff]
    %v726 = vld [vmem:[%s720 + $0x28] sm:$0xff]
    %v727 = vld [vmem:[%s720 + $0x30] sm:$0xff]
    %v728 = vld [vmem:[%s720 + $0x38] sm:$0xff]
    %s729 = scalar_lea.vmem %s4, 3
    %v730 = vld [vmem:[%s729] sm:$0x1]
    %v732 = vlaneseq
    %v733 = vshrl.u32 %v732, 7
    %v734 = vsub.s32 0, %v733
    %v735 = vrot.slane %v730, %v734
    %v738 = vsel %vm92, %v719, 0
    %740 = vmatprep.subr.mxu0 0.0
    %741 = vmatpush1.msra.mxu0 0.0
    %742 = vmatprep.subr.mxu0 0.0
    %743 = vmatpush1.msra.mxu0 0.0
    %744 = vmatprep.subr.mxu0 0.0
    %745 = vmatpush1.msra.mxu0 0.0
    %746 = vmatprep.subr.mxu0 0.0
    %747 = vmatpush1.msra.mxu0 0.0
    %748 = vmatprep.subr.mxu0 0.0
    %749 = vmatpush1.msra.mxu0 0.0
    %750 = vmatprep.subr.mxu0 0.0
    %751 = vmatpush1.msra.mxu0 0.0
    %752 = vmatprep.subr.mxu0 0.0
    %753 = vmatpush1.msra.mxu0 0.0
    %754 = vmatprep.subr.mxu0 0.0
    %755 = vmatpush1.msra.mxu0 0.0
    %756 = vmatprep.subr.mxu0 0.0
    %757 = vmatpush1.msra.mxu0 %v728
    %758 = vmatprep.subr.mxu0 0.0
    %759 = vmatpush1.msra.mxu0 %v727
    %760 = vmatprep.subr.mxu0 0.0
    %761 = vmatpush1.msra.mxu0 %v726
    %762 = vmatprep.subr.mxu0 0.0
    %763 = vmatpush1.msra.mxu0 %v725
    %764 = vmatprep.subr.mxu0 0.0
    %765 = vmatpush1.msra.mxu0 %v724
    %766 = vmatprep.subr.mxu0 0.0
    %767 = vmatpush1.msra.mxu0 %v723
    %768 = vmatprep.subr.mxu0 0.0
    %769 = vmatpush1.msra.mxu0 %v722
    %770 = vmatprep.subr.mxu0 0.0
    %771 = vmatpush1.msra.mxu0 %v721
    %772 = vmatprep.subr.mxu0 0.0
    %773 = vmatpush2.msra.mxu0 0.0
    %774 = vmatprep.subr.mxu0 0.0
    %775 = vmatpush2.msra.mxu0 0.0
    %776 = vmatprep.subr.mxu0 0.0
    %777 = vmatpush2.msra.mxu0 0.0
    %778 = vmatprep.subr.mxu0 0.0
    %779 = vmatpush2.msra.mxu0 0.0
    %780 = vmatprep.subr.mxu0 0.0
    %781 = vmatpush2.msra.mxu0 0.0
    %782 = vmatprep.subr.mxu0 0.0
    %783 = vmatpush2.msra.mxu0 0.0
    %784 = vmatprep.subr.mxu0 0.0
    %785 = vmatpush2.msra.mxu0 0.0
    %786 = vmatprep.subr.mxu0 0.0
    %787 = vmatpush2.msra.mxu0 0.0
    %788 = vmatprep.subr.mxu0 0.0
    %789 = vmatpush2.msra.mxu0 0.0
    %790 = vmatprep.subr.mxu0 0.0
    %791 = vmatpush2.msra.mxu0 0.0
    %792 = vmatprep.subr.mxu0 0.0
    %793 = vmatpush2.msra.mxu0 0.0
    %794 = vmatprep.subr.mxu0 0.0
    %795 = vmatpush2.msra.mxu0 0.0
    %796 = vmatprep.subr.mxu0 0.0
    %797 = vmatpush2.msra.mxu0 0.0
    %798 = vmatprep.subr.mxu0 0.0
    %799 = vmatpush2.msra.mxu0 0.0
    %800 = vmatprep.subr.mxu0 0.0
    %801 = vmatpush2.msra.mxu0 0.0
    %802 = vmatprep.subr.mxu0 0.0
    %803 = vmatpush2.msra.mxu0 0.0
    %804 = vmatprep.mubr.f32.mxu0 0.0
    %805 = vmatmul.mubr.f32.gmra.mxu0 %v738
    %v806 = vpop.f32.mrf.mxu0
    %v807 = vadd.f32 %v735, %v806
    %v808 = vpop.f32.mrf.mxu0
    %809 = vdwg.mxu0
    %v810 = vmax.f32 %v807, 0.0
    %v811 = vadd.f32 %v626, %v810
    %812 = vst.msk [vmem:[#allocation10] sm:$0xff] %vm92, %v811
    // Predicated region
    $region38: #{tpu_custom_call.1} parent=1 // pred_check
      _
    $region39: #{tpu_custom_call.1} parent=1 // pred_check_branch
      %814 = sbr.rel (0) target = $region41
    $region40: #{tpu_custom_call.1} parent=1 // pred_region
      %s816 = ssub.s32 128, 128
      %817 = vsyncadd [#allocation4], %s816
      %s819 = sshll.u32 [#allocation10], 4
      %s820 = int_to_ptr.vmem [resolvable:$true] %s819
      %822 = dma.vmem_to_hbm [thread:$0]  %s820, 128, %s5, [#allocation4]
    $region41: #{tpu_custom_call.1} parent=1 // pred_fallthru
      _
    // Predicated region
    $region42: #{tpu_custom_call.1} parent=1 // pred_check
      _
    $region43: #{tpu_custom_call.1} parent=1 // pred_check_branch
      %824 = sbr.rel (0) target = $region45
    $region44: #{tpu_custom_call.1} parent=1 // pred_region
      %825 = dma.done [#allocation4], 128
    $region45: #{tpu_custom_call.1} parent=1 // pred_fallthru
      _
    %826 = vsyncpa [#allocation3], 1
    %827 = vsyncpa [#allocation6], 1
    %828 = vsyncpa [#allocation9], 1
    %829 = vsyncpa [#allocation4], 1

</llo_original>
